<compile_context>
chip_gen: v7x
topology: tpu7x:2x2x1
jax: 0.10.0
libtpu: 0.0.40
codegen_flags: <defaults>
</compile_context>

<pallas_src>
import jax
import jax.numpy as jnp
from jax import lax
from jax.experimental import pallas as pl
from jax.experimental.pallas import tpu as pltpu


def _cdiv(a, b):
    return -(-a // b)


def _round_up(a, b):
    return _cdiv(a, b) * b


def _conv1d_same_kernel(x_ref, w_ref, b_ref, o_ref):
    # x_ref: (1, stride*C_in, n_pos)    de-interleaved (phase,channel) x position
    # w_ref: (n_q, C_out, stride*C_in)  packed weights, one slab per position offset
    # b_ref: (C_out, 1)                 bias (f32)
    # o_ref: (1, C_out, lanes)          lanes = b_blk * m_slot (multiple of 128)
    n_q = w_ref.shape[0]
    c_out, lanes = o_ref.shape[1], o_ref.shape[2]
    acc = jnp.zeros((c_out, lanes), jnp.float32)
    for q in range(n_q):  # short static tap loop: n_q = ceil(K / stride)
        acc = acc + jnp.dot(
            w_ref[q],
            x_ref[0, :, pl.ds(q, lanes)],
            preferred_element_type=jnp.float32,
        )
    o_ref[0] = (acc + b_ref[...].astype(jnp.float32)).astype(o_ref.dtype)


def my_conv1d_pad_same(x, weight, bias, stride, *, compute_dtype=None):
    """Equivalent of MyConv1dPadSame.forward.

    x:      (N, C_in, L)
    weight: (C_out, C_in, K)   (PyTorch Conv1d weight layout)
    bias:   (C_out,)
    compute_dtype: optional dtype (e.g. jnp.bfloat16) for the matmul operands;
                   accumulation and bias add stay in float32.
    """
    N, C_in, L = x.shape
    C_out, _, K = weight.shape
    out_dtype = x.dtype

    # --- SAME-padding arithmetic (identical to the PyTorch module) ----------
    L_out = _cdiv(L, stride)
    p = max(0, (L_out - 1) * stride + K - L)
    pad_left = p // 2

    # --- geometry ------------------------------------------------------------
    # Per-batch output slot, lane-padded to a multiple of 128.  `spill` extra
    # columns guarantee valid output positions never read past their own slot.
    spill = _cdiv(max(0, K - stride), stride)
    m_slot = _round_up(L_out + spill, 128)
    l_slot_in = stride * m_slot               # per-batch input slot length
    n_q = (K - 1) // stride + 1               # taps grouped by position offset
    q_max = n_q - 1

    # Batch grouping: ~1024 output lanes per grid step, but keep >=2 parallel
    # grid steps when N >= 2 so v7x's two TensorCores are both used.
    target_lanes = 1024
    b_blk = max(1, min(N, target_lanes // m_slot))
    n_groups = _cdiv(N, b_blk)
    if N >= 2 and n_groups < 2:
        b_blk = _cdiv(N, 2)
        n_groups = _cdiv(N, b_blk)
    N_pad = n_groups * b_blk
    lanes = b_blk * m_slot
    n_pos = lanes + q_max

    # --- wrapper-side relayout (all x-sized; no K-times im2col buffer) -------
    x_slot = jnp.pad(
        x, ((0, N_pad - N), (0, 0), (pad_left, l_slot_in - pad_left - L)))
    # (N_pad, C_in, l_slot_in) -> (G, stride*C_in, b_blk*m_slot):
    # phase-major channels on sublanes, batch-concatenated positions on lanes.
    x_phase = (
        x_slot.reshape(n_groups, b_blk, C_in, m_slot, stride)
        .transpose(0, 4, 2, 1, 3)             # (G, stride, C_in, b_blk, m_slot)
        .reshape(n_groups, stride * C_in, lanes))
    x_phase = jnp.pad(x_phase, ((0, 0), (0, 0), (0, q_max)))  # zero tail halo

    # Pack weights the same way: w_pack[q, o, r*C_in + c] = W[o, c, q*stride + r].
    k_pad = n_q * stride
    w_pack = (
        jnp.pad(weight, ((0, 0), (0, 0), (0, k_pad - K)))
        .reshape(C_out, C_in, n_q, stride)
        .transpose(2, 0, 3, 1)                # (n_q, C_out, stride, C_in)
        .reshape(n_q, C_out, stride * C_in))
    b_col = bias.reshape(C_out, 1).astype(jnp.float32)

    if compute_dtype is not None:
        x_phase = x_phase.astype(compute_dtype)
        w_pack = w_pack.astype(compute_dtype)

    itemsize = jnp.dtype(x_phase.dtype).itemsize
    cost = pl.CostEstimate(
        flops=2 * n_groups * n_q * C_out * (stride * C_in) * lanes,
        transcendentals=0,
        bytes_accessed=(x_phase.size * itemsize + w_pack.size * itemsize
                        + n_groups * C_out * lanes * jnp.dtype(out_dtype).itemsize),
    )

    # TODO(synk): for very long sequences, additionally tile the position axis
    # (with a q_max halo via manual DMA) so one batch slot cannot exceed VMEM.
    out_grp = pl.pallas_call(
        _conv1d_same_kernel,
        out_shape=jax.ShapeDtypeStruct((n_groups, C_out, lanes), out_dtype),
        grid=(n_groups,),
        in_specs=[
            pl.BlockSpec((1, stride * C_in, n_pos), lambda g: (g, 0, 0)),
            pl.BlockSpec((n_q, C_out, stride * C_in), lambda g: (0, 0, 0)),
            pl.BlockSpec((C_out, 1), lambda g: (0, 0)),
        ],
        out_specs=pl.BlockSpec((1, C_out, lanes), lambda g: (g, 0, 0)),
        compiler_params=pltpu.CompilerParams(
            dimension_semantics=("parallel",)),
        cost_estimate=cost,
    )(x_phase, w_pack, b_col)

    # Un-group, drop the batch/lane padding.
    out = (
        out_grp.reshape(n_groups, C_out, b_blk, m_slot)
        .transpose(0, 2, 1, 3)
        .reshape(N_pad, C_out, m_slot)[:N, :, :L_out])
    return out


def _reference_conv1d_pad_same(x, weight, bias, stride):
    """Pure-JAX reference (mirrors the PyTorch forward) for validation."""
    L = x.shape[-1]
    K = weight.shape[-1]
    L_out = _cdiv(L, stride)
    p = max(0, (L_out - 1) * stride + K - L)
    pad_left = p // 2
    pad_right = p - pad_left
    x_pad = jnp.pad(x, ((0, 0), (0, 0), (pad_left, pad_right)))
    out = lax.conv_general_dilated(
        x_pad, weight, window_strides=(stride,), padding="VALID",
        dimension_numbers=("NCH", "OIH", "NCH"),
    )
    return out + bias[None, :, None]


def _make_case(key, N, C_in, C_out, K, L):
    kx, kw, kb = jax.random.split(key, 3)
    bound = 1.0 / jnp.sqrt(jnp.float32(C_in * K))
    weight = jax.random.uniform(kw, (C_out, C_in, K),
                                minval=-bound, maxval=bound, dtype=jnp.float32)
    bias = jax.random.uniform(kb, (C_out,),
                              minval=-bound, maxval=bound, dtype=jnp.float32)
    x = jax.random.normal(kx, (N, C_in, L), dtype=jnp.float32)
    return x, weight, bias


if __name__ == "__main__":
    key = jax.random.PRNGKey(0)
    k1, k2 = jax.random.split(key)

    # Case 1: module config from the spec (in=4, out=8, K=5, stride=2).
    x, w, b = _make_case(k1, N=2, C_in=4, C_out=8, K=5, L=16)
    out = jax.block_until_ready(my_conv1d_pad_same(x, w, b, stride=2))
    ref = _reference_conv1d_pad_same(x, w, b, stride=2)
    assert out.shape == ref.shape, (out.shape, ref.shape)
    assert jnp.allclose(out, ref, atol=1e-5, rtol=1e-5), "f32 mismatch (case 1)"

    # Same case with bf16 operands / f32 accumulation (halved HBM traffic).
    out_bf16 = jax.block_until_ready(
        my_conv1d_pad_same(x, w, b, stride=2, compute_dtype=jnp.bfloat16))
    assert jnp.allclose(out_bf16, ref, atol=5e-2, rtol=5e-2), "bf16 mismatch"

    # Case 2: stride=1, odd batch, different channel counts (generality check).
    x2, w2, b2 = _make_case(k2, N=3, C_in=3, C_out=5, K=3, L=40)
    out2 = jax.block_until_ready(my_conv1d_pad_same(x2, w2, b2, stride=1))
    ref2 = _reference_conv1d_pad_same(x2, w2, b2, stride=1)
    assert out2.shape == ref2.shape, (out2.shape, ref2.shape)
    assert jnp.allclose(out2, ref2, atol=1e-5, rtol=1e-5), "f32 mismatch (case 2)"

    print("KERNEL_OK")
</pallas_src>

<mosaic_0001>
module attributes {stable_mosaic.version = 11 : i64} {
  func.func @_conv1d_same_kernel(%arg0: i32, %arg1: memref<1x8x130xf32, #tpu.memory_space<vmem>>, %arg2: memref<3x8x8xf32, #tpu.memory_space<vmem>>, %arg3: memref<8x1xf32, #tpu.memory_space<vmem>>, %arg4: memref<1x8x128xf32, #tpu.memory_space<vmem>>) attributes {dimension_semantics = [#tpu.dimension_semantics<parallel>], iteration_bounds = array<i64: 2>, scalar_prefetch = 0 : i64, scratch_operands = 0 : i64, tpu.core_type = #tpu.core_type<tc>, window_params = [{transform_indices = @transform_0, window_bounds = array<i64: 1, 8, 130>}, {pipeline_mode = #tpu.pipeline_mode<synchronous>, transform_indices = @transform_1, window_bounds = array<i64: 3, 8, 8>}, {pipeline_mode = #tpu.pipeline_mode<synchronous>, transform_indices = @transform_2, window_bounds = array<i64: 8, 1>}, {transform_indices = @transform_3, window_bounds = array<i64: 1, 8, 128>}]} {
    %cst = arith.constant 0.000000e+00 : f32
    %0 = vector.broadcast %cst : f32 to vector<8x128xf32>
    %c0 = arith.constant 0 : index
    %c0_0 = arith.constant 0 : index
    %c0_1 = arith.constant 0 : index
    %1 = vector.load %arg2[%c0, %c0_0, %c0_1] : memref<3x8x8xf32, #tpu.memory_space<vmem>>, vector<1x8x8xf32>
    %2 = vector.shape_cast %1 : vector<1x8x8xf32> to vector<8x8xf32>
    %c0_2 = arith.constant 0 : index
    %c0_3 = arith.constant 0 : index
    %c0_4 = arith.constant 0 : index
    %3 = vector.load %arg1[%c0_2, %c0_3, %c0_4] : memref<1x8x130xf32, #tpu.memory_space<vmem>>, vector<1x8x128xf32>
    %4 = vector.shape_cast %3 : vector<1x8x128xf32> to vector<8x128xf32>
    %cst_5 = arith.constant dense<0.000000e+00> : vector<8x128xf32>
    %5 = tpu.matmul %2, %4, %cst_5 {dimension_numbers = #tpu.dot_dimension_numbers<[1], [0], [0], [1], [0, 0, 1, 1], [], []>} : vector<8x8xf32>, vector<8x128xf32>, vector<8x128xf32> -> vector<8x128xf32>
    %6 = arith.addf %0, %5 : vector<8x128xf32>
    %c1 = arith.constant 1 : index
    %c0_6 = arith.constant 0 : index
    %c0_7 = arith.constant 0 : index
    %7 = vector.load %arg2[%c1, %c0_6, %c0_7] : memref<3x8x8xf32, #tpu.memory_space<vmem>>, vector<1x8x8xf32>
    %8 = vector.shape_cast %7 : vector<1x8x8xf32> to vector<8x8xf32>
    %c0_8 = arith.constant 0 : index
    %c0_9 = arith.constant 0 : index
    %c1_10 = arith.constant 1 : index
    %9 = vector.load %arg1[%c0_8, %c0_9, %c1_10] : memref<1x8x130xf32, #tpu.memory_space<vmem>>, vector<1x8x128xf32>
    %10 = vector.shape_cast %9 : vector<1x8x128xf32> to vector<8x128xf32>
    %cst_11 = arith.constant dense<0.000000e+00> : vector<8x128xf32>
    %11 = tpu.matmul %8, %10, %cst_11 {dimension_numbers = #tpu.dot_dimension_numbers<[1], [0], [0], [1], [0, 0, 1, 1], [], []>} : vector<8x8xf32>, vector<8x128xf32>, vector<8x128xf32> -> vector<8x128xf32>
    %12 = arith.addf %6, %11 : vector<8x128xf32>
    %c2 = arith.constant 2 : index
    %c0_12 = arith.constant 0 : index
    %c0_13 = arith.constant 0 : index
    %13 = vector.load %arg2[%c2, %c0_12, %c0_13] : memref<3x8x8xf32, #tpu.memory_space<vmem>>, vector<1x8x8xf32>
    %14 = vector.shape_cast %13 : vector<1x8x8xf32> to vector<8x8xf32>
    %c0_14 = arith.constant 0 : index
    %c0_15 = arith.constant 0 : index
    %c2_16 = arith.constant 2 : index
    %15 = vector.load %arg1[%c0_14, %c0_15, %c2_16] : memref<1x8x130xf32, #tpu.memory_space<vmem>>, vector<1x8x128xf32>
    %16 = vector.shape_cast %15 : vector<1x8x128xf32> to vector<8x128xf32>
    %cst_17 = arith.constant dense<0.000000e+00> : vector<8x128xf32>
    %17 = tpu.matmul %14, %16, %cst_17 {dimension_numbers = #tpu.dot_dimension_numbers<[1], [0], [0], [1], [0, 0, 1, 1], [], []>} : vector<8x8xf32>, vector<8x128xf32>, vector<8x128xf32> -> vector<8x128xf32>
    %18 = arith.addf %12, %17 : vector<8x128xf32>
    %c0_18 = arith.constant 0 : index
    %c0_19 = arith.constant 0 : index
    %19 = vector.load %arg3[%c0_18, %c0_19] : memref<8x1xf32, #tpu.memory_space<vmem>>, vector<8x1xf32>
    %20 = vector.broadcast %19 : vector<8x1xf32> to vector<8x128xf32>
    %21 = arith.addf %18, %20 : vector<8x128xf32>
    %c0_20 = arith.constant 0 : index
    %c0_21 = arith.constant 0 : index
    %c0_22 = arith.constant 0 : index
    %22 = vector.load %arg4[%c0_20, %c0_21, %c0_22] : memref<1x8x128xf32, #tpu.memory_space<vmem>>, vector<1x8x128xf32>
    %23 = vector.shape_cast %22 : vector<1x8x128xf32> to vector<8x128xf32>
    %24 = vector.shape_cast %21 : vector<8x128xf32> to vector<1x8x128xf32>
    tpu.vector_store %arg4[%c0_20, %c0_21, %c0_22], %24 {strides = array<i32>} : memref<1x8x128xf32, #tpu.memory_space<vmem>>, vector<1x8x128xf32>,
    return
  }
  func.func @transform_0(%arg0: i32) -> (i32, i32, i32) {
    %c0_i32 = arith.constant 0 : i32
    %c0_i32_0 = arith.constant 0 : i32
    %c0_i32_1 = arith.constant 0 : i32
    return %arg0, %c0_i32, %c0_i32_0 : i32, i32, i32
  }
  func.func @transform_1(%arg0: i32) -> (i32, i32, i32) {
    %c0_i32 = arith.constant 0 : i32
    %c0_i32_0 = arith.constant 0 : i32
    %c0_i32_1 = arith.constant 0 : i32
    %c0_i32_2 = arith.constant 0 : i32
    return %c0_i32, %c0_i32_0, %c0_i32_1 : i32, i32, i32
  }
  func.func @transform_2(%arg0: i32) -> (i32, i32) {
    %c0_i32 = arith.constant 0 : i32
    %c0_i32_0 = arith.constant 0 : i32
    %c0_i32_1 = arith.constant 0 : i32
    return %c0_i32, %c0_i32_0 : i32, i32
  }
  func.func @transform_3(%arg0: i32) -> (i32, i32, i32) {
    %c0_i32 = arith.constant 0 : i32
    %c0_i32_0 = arith.constant 0 : i32
    %c0_i32_1 = arith.constant 0 : i32
    return %arg0, %c0_i32, %c0_i32_0 : i32, i32, i32
  }
}

</mosaic_0001>

<llo_original>
// kernel: tpu_custom_call.1
$region0: #{tpu_custom_call.1}
  #allocation0 [shape = 'u32[]', space=smem, size = 0x4, offset = 0x4, fixed_abs, tag = 'smem constant byte address 0x4 - core index']
  #allocation1 [shape = 'u32[144,128]{1,0:T(1,128)}', space=vmem, size = 0x12000, scoped, tag = 'internal scratch']
  %s0 = inlined_call_operand.hbm [shape: f32[2,8,130], index: 0, kind: input, shape index: {}]
  %s1 = inlined_call_operand.hbm [shape: f32[3,8,8], index: 1, kind: input, shape index: {}]
  %s2 = inlined_call_operand.vmem [shape: f32[8,1], index: 2, kind: input, shape index: {}]
  %s3 = inlined_call_operand.hbm [shape: f32[2,8,128], index: 3, kind: output, shape index: {}]
  %s4 = sld [smem:[#allocation0]]
  $region53: #{tpu_custom_call.1} parent=0
    _
  %s6 = ssub.s32 1, %s4
  %s7 = scalar_select 0, %s6, %s4
  $region1: #{tpu_custom_call.1} parent=0
    #allocation2 [shape = 'u8[16384]{0}', space=vmem, size = 0x4000, scoped, tag = 'input window, operand 0']
    #allocation3 [shape = 's32[2]{0}', space=sflag, size = 0x8, scoped, tag = 'scoped memory for tpu_custom_call.1']
    #allocation4 [shape = 's32[2]{0}', space=sflag, size = 0x8, scoped, tag = 'scoped memory for tpu_custom_call.1']
    #allocation5 [shape = 'u8[12288]{0}', space=vmem, size = 0x3000, scoped, tag = 'input window, operand 1, single buffered']
    #allocation6 [shape = 's32[1]{0}', space=sflag, size = 0x4, scoped, tag = 'scoped memory for tpu_custom_call.1']
    #allocation7 [shape = 'u8[8192]{0}', space=vmem, size = 0x2000, scoped, tag = 'output window, operand 0']
    %8 = vsyncpa [#allocation3], 0
    %s9 = scalar_lea.sflag [#allocation3], 1
    %10 = vsyncpa %s9, 0
    %11 = vsyncpa [#allocation6], 0
    %12 = vsyncpa [#allocation4], 0
    %s13 = scalar_lea.sflag [#allocation4], 1
    %14 = vsyncpa %s13, 0
    loop: start=0, step=1, limit=4
    $region2: #{tpu_custom_call.1} parent=1 // loop_pre_header
      _
    $region3: #{tpu_custom_call.1} parent=1 // loop_header
      %s16 = sphi 0, %s20
      %p17 = scmp.ge.s32.totalorder %s16, 4
      %s26 = sphi 0, %s28
      %s29 = sphi 0, %s26
      %s30 = sphi 0, %s29
      %s46 = sphi 0, %s30
      %s50 = sphi 0, %s50
      %s52 = sphi 0, %s50
      %s53 = sphi 0, %s52
      %s67 = sphi 0, %s53
      %s71 = sphi 0, %s71
      %s73 = sphi 0, %s71
      %s74 = sphi 0, %s73
      %s88 = sphi 0, %s74
      %s94 = sphi 0, %s96
      %s97 = sphi 0, %s94
      %s98 = sphi 0, %s97
      %s114 = sphi 0, %s98
    $region4: #{tpu_custom_call.1} parent=1 // loop_header_branch
      %19 = sbr.rel (%p17) target = $region8
    $region5: #{tpu_custom_call.1} parent=1 // loop_body
      %s21 = ssub.s32 %s16, 1
      %s22 = ssub.s32 %s16, 2
      %s23 = sadd.s32 %s16, 1
      %s24 = ssub.s32 %s16, %s23
      %p25 = scmp.eq.s32.totalorder %s24, 0
      %s27 = sadd.s32 %s26, 1
      %s28 = scalar_select %p25, %s26, %s27
      %p31 = pneg %p25
      %p32 = scmp.eq.s32.totalorder %s16, 1
      %p33 = por %p31, %p32
      %p34 = scmp.ne.s32.totalorder %s26, %s29
      %p35 = scmp.eq.s32.totalorder %s16, 0
      %p36 = por %p34, %p35
      %p37 = scmp.ne.s32.totalorder %s26, %s29
      %p38 = scmp.eq.s32.totalorder %s21, 1
      %p39 = por %p37, %p38
      %p40 = scmp.ne.s32.totalorder %s29, %s30
      %p41 = scmp.eq.s32.totalorder %s21, 0
      %p42 = por %p40, %p41
      %p43 = scmp.ne.s32.totalorder %s29, %s30
      %p44 = scmp.eq.s32.totalorder %s22, 1
      %p45 = por %p43, %p44
      %p47 = scmp.ne.s32.totalorder %s30, %s46
      %p48 = scmp.eq.s32.totalorder %s22, 0
      %p49 = por %p47, %p48
      %s51 = sadd.s32 %s50, 1
      %p54 = scmp.eq.s32.totalorder %s16, 1
      %p55 = scmp.ne.s32.totalorder %s50, %s52
      %p56 = scmp.eq.s32.totalorder %s16, 0
      %p57 = por %p55, %p56
      %p58 = scmp.ne.s32.totalorder %s50, %s52
      %p59 = scmp.eq.s32.totalorder %s21, 1
      %p60 = por %p58, %p59
      %p61 = scmp.ne.s32.totalorder %s52, %s53
      %p62 = scmp.eq.s32.totalorder %s21, 0
      %p63 = por %p61, %p62
      %p64 = scmp.ne.s32.totalorder %s52, %s53
      %p65 = scmp.eq.s32.totalorder %s22, 1
      %p66 = por %p64, %p65
      %p68 = scmp.ne.s32.totalorder %s53, %s67
      %p69 = scmp.eq.s32.totalorder %s22, 0
      %p70 = por %p68, %p69
      %s72 = sadd.s32 %s71, 1
      %p75 = scmp.eq.s32.totalorder %s16, 1
      %p76 = scmp.ne.s32.totalorder %s71, %s73
      %p77 = scmp.eq.s32.totalorder %s16, 0
      %p78 = por %p76, %p77
      %p79 = scmp.ne.s32.totalorder %s71, %s73
      %p80 = scmp.eq.s32.totalorder %s21, 1
      %p81 = por %p79, %p80
      %p82 = scmp.ne.s32.totalorder %s73, %s74
      %p83 = scmp.eq.s32.totalorder %s21, 0
      %p84 = por %p82, %p83
      %p85 = scmp.ne.s32.totalorder %s73, %s74
      %p86 = scmp.eq.s32.totalorder %s22, 1
      %p87 = por %p85, %p86
      %p89 = scmp.ne.s32.totalorder %s74, %s88
      %p90 = scmp.eq.s32.totalorder %s22, 0
      %p91 = por %p89, %p90
      %s92 = ssub.s32 %s16, %s23
      %p93 = scmp.eq.s32.totalorder %s92, 0
      %s95 = sadd.s32 %s94, 1
      %s96 = scalar_select %p93, %s94, %s95
      %p99 = pneg %p93
      %p100 = scmp.eq.s32.totalorder %s16, 1
      %p101 = por %p99, %p100
      %p102 = scmp.ne.s32.totalorder %s94, %s97
      %p103 = scmp.eq.s32.totalorder %s16, 0
      %p104 = por %p102, %p103
      %p105 = scmp.ne.s32.totalorder %s94, %s97
      %p106 = scmp.eq.s32.totalorder %s21, 1
      %p107 = por %p105, %p106
      %p108 = scmp.ne.s32.totalorder %s97, %s98
      %p109 = scmp.eq.s32.totalorder %s21, 0
      %p110 = por %p108, %p109
      %p111 = scmp.ne.s32.totalorder %s97, %s98
      %p112 = scmp.eq.s32.totalorder %s22, 1
      %p113 = por %p111, %p112
      %p115 = scmp.ne.s32.totalorder %s98, %s114
      %p116 = scmp.eq.s32.totalorder %s22, 0
      %p117 = por %p115, %p116
      %p118 = scmp.le.s32.totalorder 1, %s16
      %p119 = scmp.lt.s32.totalorder %s16, 3
      %p120 = pnand %p118, %p119
      %p121 = pneg %p120
      // Predicated region
      $region9: #{tpu_custom_call.1} parent=5 // pred_check
        _
      $region10: #{tpu_custom_call.1} parent=5 // pred_check_branch
        %123 = sbr.rel (%p120) target = $region12
      $region11: #{tpu_custom_call.1} parent=5 // pred_region
        %s124 = ssub.s32 %s16, 1
        // Predicated region
        $region13: #{tpu_custom_call.1} parent=11 // pred_check
          %p125 = pneg %p63
        $region14: #{tpu_custom_call.1} parent=11 // pred_check_branch
          %127 = sbr.rel (%p125) target = $region16
        $region15: #{tpu_custom_call.1} parent=11 // pred_region
          %s129 = ssub.s32 384, 384
          %130 = vsyncadd [#allocation6], %s129
          %s131 = sshll.u32 [#allocation5], 4
          %s132 = int_to_ptr.vmem [resolvable:$true] %s131
          %137 = dma.hbm_to_vmem [thread:$0]  %s1, 384, %s132, [#allocation6], 128, 128, 8
        $region16: #{tpu_custom_call.1} parent=11 // pred_fallthru
          _
        // Predicated region
        $region17: #{tpu_custom_call.1} parent=11 // pred_check
          %p138 = pneg %p84
        $region18: #{tpu_custom_call.1} parent=11 // pred_check_branch
          %140 = sbr.rel (%p138) target = $region20
        $region19: #{tpu_custom_call.1} parent=11 // pred_region
          _
        $region20: #{tpu_custom_call.1} parent=11 // pred_fallthru
          _
      $region12: #{tpu_custom_call.1} parent=5 // pred_fallthru
        _
      %p141 = scmp.lt.s32.totalorder %s16, 2
      // Predicated region
      $region21: #{tpu_custom_call.1} parent=5 // pred_check
        %p142 = pneg %p141
      $region22: #{tpu_custom_call.1} parent=5 // pred_check_branch
        %144 = sbr.rel (%p142) target = $region24
      $region23: #{tpu_custom_call.1} parent=5 // pred_region
        // Predicated region
        $region25: #{tpu_custom_call.1} parent=23 // pred_check
          %p145 = pneg %p36
        $region26: #{tpu_custom_call.1} parent=23 // pred_check_branch
          %147 = sbr.rel (%p145) target = $region28
        $region27: #{tpu_custom_call.1} parent=23 // pred_region
          %s148 = sand.u32 %s26, 1
          %s149 = scalar_lea.sflag [#allocation3], %s148
          %s150 = sand.u32 %s26, 1
          %s151 = smul.addr %s150, 16
          %s152 = scalar_lea.vmem [#allocation2], %s151
          %s154 = ssub.s32 256, 256
          %155 = vsyncadd %s149, %s154
          %s156 = smul.addr %s16, 2
          %s157 = smul.addr %s156, 128
          %s158 = scalar_lea.hbm %s0, %s157
          %s160 = sshll.u32 %s152, 4
          %s161 = int_to_ptr.vmem [resolvable:$true] %s160
          %163 = dma.hbm_to_vmem [thread:$0]  %s158, 256, %s161, %s149
        $region28: #{tpu_custom_call.1} parent=23 // pred_fallthru
          _
      $region24: #{tpu_custom_call.1} parent=5 // pred_fallthru
        _
      %p164 = scmp.le.s32.totalorder 1, %s16
      %p165 = scmp.lt.s32.totalorder %s16, 3
      %p166 = pnand %p164, %p165
      %p167 = pneg %p166
      // Predicated region
      $region29: #{tpu_custom_call.1} parent=5 // pred_check
        _
      $region30: #{tpu_custom_call.1} parent=5 // pred_check_branch
        %169 = sbr.rel (%p166) target = $region32
      $region31: #{tpu_custom_call.1} parent=5 // pred_region
        %s170 = ssub.s32 %s16, 1
        %s171 = sand.u32 %s29, 1
        %s172 = scalar_lea.sflag [#allocation3], %s171
        %s173 = sand.u32 %s29, 1
        %s174 = smul.addr %s173, 16
        %s175 = scalar_lea.vmem [#allocation2], %s174
        // Predicated region
        $region33: #{tpu_custom_call.1} parent=31 // pred_check
          %p176 = pneg %p42
        $region34: #{tpu_custom_call.1} parent=31 // pred_check_branch
          %178 = sbr.rel (%p176) target = $region36
        $region35: #{tpu_custom_call.1} parent=31 // pred_region
          %179 = dma.done %s172, 256
        $region36: #{tpu_custom_call.1} parent=31 // pred_fallthru
          _
        // Predicated region
        $region37: #{tpu_custom_call.1} parent=31 // pred_check
          %p180 = pneg %p63
        $region38: #{tpu_custom_call.1} parent=31 // pred_check_branch
          %182 = sbr.rel (%p180) target = $region40
        $region39: #{tpu_custom_call.1} parent=31 // pred_region
          %183 = dma.done [#allocation6], 384
        $region40: #{tpu_custom_call.1} parent=31 // pred_fallthru
          _
        %s184 = sand.u32 %s29, 1
        %s185 = scalar_lea.sflag [#allocation3], %s184
        %s186 = sand.u32 %s29, 1
        %s187 = smul.addr %s186, 16
        %s188 = scalar_lea.vmem [#allocation2], %s187
        %p189 = pneg %p42
        %p190 = pneg %p39
        %p191 = pneg %p63
        %p192 = pneg %p60
        %p193 = pneg %p84
        %p194 = pneg %p81
        %p195 = pneg %p110
        %p196 = pneg %p107
        %s197 = sand.u32 %s97, 1
        %s198 = scalar_lea.sflag [#allocation4], %s197
        %s199 = sand.u32 %s97, 1
        %s200 = smul.addr %s199, 8
        %s201 = scalar_lea.vmem [#allocation7], %s200
        %v202 = vld [vmem:[#allocation5] sm:$0xff]
        %v203 = vld [vmem:[%s175] sm:$0xff]
        %s204 = scalar_lea.vmem [#allocation5], 8
        %v205 = vld [vmem:[%s204] sm:$0xff]
        %v206 = vld [vmem:[%s175 + $0x8] sm:$0xff]
        %209 = vrot.lane.b32.xlu0 %v203, 127
        %v210 = vpop.permute.xlu0 %209
        %211 = vrot.lane.b32.xlu0 %v206, 127
        %v212 = vpop.permute.xlu0 %211
        %vm213 = vcmask 1039360
        %v214 = vsel %vm213, %v210, %v212
        %vm216 = vcmask 64512
        %v218 = vsel %vm216, %v205, 0
        %220 = vmatprep.subr.mxu0 0.0
        %221 = vmatpush1.msra.mxu0 %v214
        %222 = vmatprep.subr.mxu0 0.0
        %223 = vmatpush1.msra.mxu0 0.0
        %224 = vmatprep.subr.mxu0 0.0
        %225 = vmatpush1.msra.mxu0 0.0
        %226 = vmatprep.subr.mxu0 0.0
        %227 = vmatpush1.msra.mxu0 0.0
        %228 = vmatprep.subr.mxu0 0.0
        %229 = vmatpush1.msra.mxu0 0.0
        %230 = vmatprep.subr.mxu0 0.0
        %231 = vmatpush1.msra.mxu0 0.0
        %232 = vmatprep.subr.mxu0 0.0
        %233 = vmatpush1.msra.mxu0 0.0
        %234 = vmatprep.subr.mxu0 0.0
        %235 = vmatpush1.msra.mxu0 0.0
        %236 = vmatprep.subr.mxu0 0.0
        %237 = vmatpush1.msra.mxu0 0.0
        %238 = vmatprep.subr.mxu0 0.0
        %239 = vmatpush1.msra.mxu0 0.0
        %240 = vmatprep.subr.mxu0 0.0
        %241 = vmatpush1.msra.mxu0 0.0
        %242 = vmatprep.subr.mxu0 0.0
        %243 = vmatpush1.msra.mxu0 0.0
        %244 = vmatprep.subr.mxu0 0.0
        %245 = vmatpush1.msra.mxu0 0.0
        %246 = vmatprep.subr.mxu0 0.0
        %247 = vmatpush1.msra.mxu0 0.0
        %248 = vmatprep.subr.mxu0 0.0
        %249 = vmatpush1.msra.mxu0 0.0
        %250 = vmatprep.subr.mxu0 0.0
        %251 = vmatpush1.msra.mxu0 0.0
        %252 = vmatprep.subr.mxu0 0.0
        %253 = vmatpush1.msra.mxu0 0.0
        %254 = vmatprep.subr.mxu0 0.0
        %255 = vmatpush1.msra.mxu0 0.0
        %256 = vmatprep.subr.mxu0 0.0
        %257 = vmatpush1.msra.mxu0 0.0
        %258 = vmatprep.subr.mxu0 0.0
        %259 = vmatpush1.msra.mxu0 0.0
        %260 = vmatprep.subr.mxu0 0.0
        %261 = vmatpush1.msra.mxu0 0.0
        %262 = vmatprep.subr.mxu0 0.0
        %263 = vmatpush1.msra.mxu0 0.0
        %264 = vmatprep.subr.mxu0 0.0
        %265 = vmatpush1.msra.mxu0 0.0
        %266 = vmatprep.subr.mxu0 0.0
        %267 = vmatpush1.msra.mxu0 0.0
        %268 = vmatprep.subr.mxu0 0.0
        %269 = vmatpush1.msra.mxu0 0.0
        %270 = vmatprep.subr.mxu0 0.0
        %271 = vmatpush1.msra.mxu0 0.0
        %272 = vmatprep.subr.mxu0 0.0
        %273 = vmatpush1.msra.mxu0 0.0
        %274 = vmatprep.subr.mxu0 0.0
        %275 = vmatpush1.msra.mxu0 0.0
        %276 = vmatprep.subr.mxu0 0.0
        %277 = vmatpush1.msra.mxu0 0.0
        %278 = vmatprep.subr.mxu0 0.0
        %279 = vmatpush1.msra.mxu0 0.0
        %280 = vmatprep.subr.mxu0 0.0
        %281 = vmatpush1.msra.mxu0 0.0
        %282 = vmatprep.subr.mxu0 0.0
        %283 = vmatpush1.msra.mxu0 0.0
        %284 = vmatprep.mubr.f32.mxu0 0.0
        %285 = vmatmul.mubr.f32.gmra.mrb[0].mxu0 %v218
        %v286 = vpop.f32.mrb[0].mxu0
        %v287 = vadd.f32 0.0, %v286
        %v288 = vpop.f32.mrb[0].mxu0
        %289 = vdwg.mxu0
        %v291 = vsel %vm216, %v202, 0
        %293 = vmatprep.subr.mxu0 0.0
        %294 = vmatpush1.msra.mxu0 %v203
        %295 = vmatprep.subr.mxu0 0.0
        %296 = vmatpush1.msra.mxu0 0.0
        %297 = vmatprep.subr.mxu0 0.0
        %298 = vmatpush1.msra.mxu0 0.0
        %299 = vmatprep.subr.mxu0 0.0
        %300 = vmatpush1.msra.mxu0 0.0
        %301 = vmatprep.subr.mxu0 0.0
        %302 = vmatpush1.msra.mxu0 0.0
        %303 = vmatprep.subr.mxu0 0.0
        %304 = vmatpush1.msra.mxu0 0.0
        %305 = vmatprep.subr.mxu0 0.0
        %306 = vmatpush1.msra.mxu0 0.0
        %307 = vmatprep.subr.mxu0 0.0
        %308 = vmatpush1.msra.mxu0 0.0
        %309 = vmatprep.subr.mxu0 0.0
        %310 = vmatpush1.msra.mxu0 0.0
        %311 = vmatprep.subr.mxu0 0.0
        %312 = vmatpush1.msra.mxu0 0.0
        %313 = vmatprep.subr.mxu0 0.0
        %314 = vmatpush1.msra.mxu0 0.0
        %315 = vmatprep.subr.mxu0 0.0
        %316 = vmatpush1.msra.mxu0 0.0
        %317 = vmatprep.subr.mxu0 0.0
        %318 = vmatpush1.msra.mxu0 0.0
        %319 = vmatprep.subr.mxu0 0.0
        %320 = vmatpush1.msra.mxu0 0.0
        %321 = vmatprep.subr.mxu0 0.0
        %322 = vmatpush1.msra.mxu0 0.0
        %323 = vmatprep.subr.mxu0 0.0
        %324 = vmatpush1.msra.mxu0 0.0
        %325 = vmatprep.subr.mxu0 0.0
        %326 = vmatpush1.msra.mxu0 0.0
        %327 = vmatprep.subr.mxu0 0.0
        %328 = vmatpush1.msra.mxu0 0.0
        %329 = vmatprep.subr.mxu0 0.0
        %330 = vmatpush1.msra.mxu0 0.0
        %331 = vmatprep.subr.mxu0 0.0
        %332 = vmatpush1.msra.mxu0 0.0
        %333 = vmatprep.subr.mxu0 0.0
        %334 = vmatpush1.msra.mxu0 0.0
        %335 = vmatprep.subr.mxu0 0.0
        %336 = vmatpush1.msra.mxu0 0.0
        %337 = vmatprep.subr.mxu0 0.0
        %338 = vmatpush1.msra.mxu0 0.0
        %339 = vmatprep.subr.mxu0 0.0
        %340 = vmatpush1.msra.mxu0 0.0
        %341 = vmatprep.subr.mxu0 0.0
        %342 = vmatpush1.msra.mxu0 0.0
        %343 = vmatprep.subr.mxu0 0.0
        %344 = vmatpush1.msra.mxu0 0.0
        %345 = vmatprep.subr.mxu0 0.0
        %346 = vmatpush1.msra.mxu0 0.0
        %347 = vmatprep.subr.mxu0 0.0
        %348 = vmatpush1.msra.mxu0 0.0
        %349 = vmatprep.subr.mxu0 0.0
        %350 = vmatpush1.msra.mxu0 0.0
        %351 = vmatprep.subr.mxu0 0.0
        %352 = vmatpush1.msra.mxu0 0.0
        %353 = vmatprep.subr.mxu0 0.0
        %354 = vmatpush1.msra.mxu0 0.0
        %355 = vmatprep.subr.mxu0 0.0
        %356 = vmatpush1.msra.mxu0 0.0
        %357 = vmatprep.mubr.f32.mxu0 0.0
        %358 = vmatmul.mubr.f32.gmra.mrb[0].mxu0 %v291
        %v359 = vpop.f32.mrb[0].mxu0
        %v360 = vadd.f32 %v287, %v359
        %v361 = vpop.f32.mrb[0].mxu0
        %362 = vdwg.mxu0
        %s363 = scalar_lea.vmem [#allocation5], 16
        %v364 = vld [vmem:[%s363] sm:$0xff]
        %365 = vrot.lane.b32.xlu0 %v203, 126
        %v366 = vpop.permute.xlu0 %365
        %367 = vrot.lane.b32.xlu0 %v206, 126
        %v368 = vpop.permute.xlu0 %367
        %vm369 = vcmask 1031168
        %v370 = vsel %vm369, %v366, %v368
        %v373 = vsel %vm216, %v364, 0
        %375 = vmatprep.subr.mxu0 0.0
        %376 = vmatpush1.msra.mxu0 %v370
        %377 = vmatprep.subr.mxu0 0.0
        %378 = vmatpush1.msra.mxu0 0.0
        %379 = vmatprep.subr.mxu0 0.0
        %380 = vmatpush1.msra.mxu0 0.0
        %381 = vmatprep.subr.mxu0 0.0
        %382 = vmatpush1.msra.mxu0 0.0
        %383 = vmatprep.subr.mxu0 0.0
        %384 = vmatpush1.msra.mxu0 0.0
        %385 = vmatprep.subr.mxu0 0.0
        %386 = vmatpush1.msra.mxu0 0.0
        %387 = vmatprep.subr.mxu0 0.0
        %388 = vmatpush1.msra.mxu0 0.0
        %389 = vmatprep.subr.mxu0 0.0
        %390 = vmatpush1.msra.mxu0 0.0
        %391 = vmatprep.subr.mxu0 0.0
        %392 = vmatpush1.msra.mxu0 0.0
        %393 = vmatprep.subr.mxu0 0.0
        %394 = vmatpush1.msra.mxu0 0.0
        %395 = vmatprep.subr.mxu0 0.0
        %396 = vmatpush1.msra.mxu0 0.0
        %397 = vmatprep.subr.mxu0 0.0
        %398 = vmatpush1.msra.mxu0 0.0
        %399 = vmatprep.subr.mxu0 0.0
        %400 = vmatpush1.msra.mxu0 0.0
        %401 = vmatprep.subr.mxu0 0.0
        %402 = vmatpush1.msra.mxu0 0.0
        %403 = vmatprep.subr.mxu0 0.0
        %404 = vmatpush1.msra.mxu0 0.0
        %405 = vmatprep.subr.mxu0 0.0
        %406 = vmatpush1.msra.mxu0 0.0
        %407 = vmatprep.subr.mxu0 0.0
        %408 = vmatpush1.msra.mxu0 0.0
        %409 = vmatprep.subr.mxu0 0.0
        %410 = vmatpush1.msra.mxu0 0.0
        %411 = vmatprep.subr.mxu0 0.0
        %412 = vmatpush1.msra.mxu0 0.0
        %413 = vmatprep.subr.mxu0 0.0
        %414 = vmatpush1.msra.mxu0 0.0
        %415 = vmatprep.subr.mxu0 0.0
        %416 = vmatpush1.msra.mxu0 0.0
        %417 = vmatprep.subr.mxu0 0.0
        %418 = vmatpush1.msra.mxu0 0.0
        %419 = vmatprep.subr.mxu0 0.0
        %420 = vmatpush1.msra.mxu0 0.0
        %421 = vmatprep.subr.mxu0 0.0
        %422 = vmatpush1.msra.mxu0 0.0
        %423 = vmatprep.subr.mxu0 0.0
        %424 = vmatpush1.msra.mxu0 0.0
        %425 = vmatprep.subr.mxu0 0.0
        %426 = vmatpush1.msra.mxu0 0.0
        %427 = vmatprep.subr.mxu0 0.0
        %428 = vmatpush1.msra.mxu0 0.0
        %429 = vmatprep.subr.mxu0 0.0
        %430 = vmatpush1.msra.mxu0 0.0
        %431 = vmatprep.subr.mxu0 0.0
        %432 = vmatpush1.msra.mxu0 0.0
        %433 = vmatprep.subr.mxu0 0.0
        %434 = vmatpush1.msra.mxu0 0.0
        %435 = vmatprep.subr.mxu0 0.0
        %436 = vmatpush1.msra.mxu0 0.0
        %437 = vmatprep.subr.mxu0 0.0
        %438 = vmatpush1.msra.mxu0 0.0
        %439 = vmatprep.mubr.f32.mxu0 0.0
        %440 = vmatmul.mubr.f32.gmra.mrb[0].mxu0 %v373
        %v441 = vpop.f32.mrb[0].mxu0
        %v442 = vadd.f32 0.0, %v441
        %v443 = vpop.f32.mrb[0].mxu0
        %444 = vdwg.mxu0
        %v445 = vadd.f32 %v360, %v442
        %v446 = vld [vmem:[%s2] sm:$0xff]
        %448 = vset.pattern.permute.xlu0 0
        %449 = vperm.xlu0 %448, %v446
        %v450 = vpop.permute.xlu0 %449
        %v452 = vadd.f32 %v445, %v450
        %453 = vst [vmem:[%s201] sm:$0xff] %v452
        %s454 = sand.u32 %s97, 1
        %s455 = scalar_lea.sflag [#allocation4], %s454
        %s456 = sand.u32 %s97, 1
        %s457 = smul.addr %s456, 8
        %s458 = scalar_lea.vmem [#allocation7], %s457
        // Predicated region
        $region41: #{tpu_custom_call.1} parent=31 // pred_check
          %p459 = pneg %p107
        $region42: #{tpu_custom_call.1} parent=31 // pred_check_branch
          %461 = sbr.rel (%p459) target = $region44
        $region43: #{tpu_custom_call.1} parent=31 // pred_region
          %s463 = ssub.s32 128, 128
          %464 = vsyncadd %s455, %s463
          %s465 = smul.addr %s21, 128
          %s466 = scalar_lea.hbm %s3, %s465
          %s468 = sshll.u32 %s458, 4
          %s469 = int_to_ptr.vmem [resolvable:$true] %s468
          %471 = dma.vmem_to_hbm [thread:$0]  %s469, 128, %s466, %s455
        $region44: #{tpu_custom_call.1} parent=31 // pred_fallthru
          _
      $region32: #{tpu_custom_call.1} parent=5 // pred_fallthru
        _
      %p472 = scmp.le.s32.totalorder 2, %s16
      // Predicated region
      $region45: #{tpu_custom_call.1} parent=5 // pred_check
        %p473 = pneg %p472
      $region46: #{tpu_custom_call.1} parent=5 // pred_check_branch
        %475 = sbr.rel (%p473) target = $region48
      $region47: #{tpu_custom_call.1} parent=5 // pred_region
        %s476 = ssub.s32 %s16, 2
        // Predicated region
        $region49: #{tpu_custom_call.1} parent=47 // pred_check
          %p477 = pneg %p113
        $region50: #{tpu_custom_call.1} parent=47 // pred_check_branch
          %479 = sbr.rel (%p477) target = $region52
        $region51: #{tpu_custom_call.1} parent=47 // pred_region
          %s480 = sand.u32 %s98, 1
          %s481 = scalar_lea.sflag [#allocation4], %s480
          %s482 = sand.u32 %s98, 1
          %s483 = smul.addr %s482, 8
          %s484 = scalar_lea.vmem [#allocation7], %s483
          %485 = dma.done %s481, 128
        $region52: #{tpu_custom_call.1} parent=47 // pred_fallthru
          _
      $region48: #{tpu_custom_call.1} parent=5 // pred_fallthru
        _
    $region6: #{tpu_custom_call.1} parent=1 // loop_footer
      %s20 = sadd.s32 1, %s16
    $region7: #{tpu_custom_call.1} parent=1 // loop_footer_branch
      %15 = sbr.rel target = $region3
    $region8: #{tpu_custom_call.1} parent=1 // loop_exit
      _
    %486 = vsyncpa [#allocation3], 1
    %s487 = scalar_lea.sflag [#allocation3], 1
    %488 = vsyncpa %s487, 1
    %489 = vsyncpa [#allocation6], 1
    %490 = vsyncpa [#allocation4], 1
    %s491 = scalar_lea.sflag [#allocation4], 1
    %492 = vsyncpa %s491, 1

</llo_original>
